<compile_context>
chip_gen: v5e
topology: v5e:2x2
jax: 0.10.0
libtpu: 0.0.40
codegen_flags: <defaults>
</compile_context>

<pallas_src>
import functools

import jax
import jax.numpy as jnp
from jax.experimental import pallas as pl
from jax.experimental.pallas import tpu as pltpu


# ---------------------------------------------------------------------------
# tiling helpers
# ---------------------------------------------------------------------------
_VMEM_LIMIT = 40 * 1024 * 1024        # safe on v5e/v6e (128 MiB) and v7x (64 MiB phys)
_POOL_BLOCK_BYTES = 8 * 1024 * 1024   # ctx input double-buffered  -> ~16 MiB live
_APPLY_BLOCK_BYTES = 6 * 1024 * 1024  # x in + out, each double-buffered -> ~24 MiB live
_MAX_LANE_TILE = 32 * 1024


def _round_up(v, m):
    return ((v + m - 1) // m) * m


def _sublane_pack(dtype):
    # f32 -> 8, bf16 -> 16, int8/fp8 -> 32 (sub-32-bit dtypes pack along sublanes)
    return max(8, 32 // jnp.dtype(dtype).itemsize)


def _pick_tiles(rows, S, dtype, block_bytes):
    """Pick (tile_r, tile_s): one block ~ block_bytes, lane tile a multiple of
    128 (or S itself when S < 128), sublane tile a multiple of the dtype's
    sublane packing (or rows itself when rows is tiny).  No block dimension
    exceeds the array — ragged tails are handled by a cdiv grid in-kernel."""
    itemsize = jnp.dtype(dtype).itemsize
    sp = _sublane_pack(dtype)
    block_bytes = max(block_bytes, sp * 128 * itemsize)

    # Lane (last-dim) tile.
    if S <= 128:
        tile_s = S                                   # full dim, exact block
    else:
        s_floor = (S // 128) * 128                   # largest 128-multiple <= S
        cap = (block_bytes // (sp * itemsize)) // 128 * 128
        tile_s = max(128, min(s_floor, cap, _MAX_LANE_TILE))

    # Sublane (second-minor) tile, sized jointly from the remaining budget.
    if rows <= sp:
        tile_r = rows                                # full dim
    else:
        r_floor = (rows // sp) * sp
        cap_r = (block_bytes // (tile_s * itemsize)) // sp * sp
        tile_r = max(sp, min(r_floor, cap_r))
    return tile_r, tile_s


def _split_rows_for_megacore(tile_r, rows, dtype):
    """If the parallel row axis would collapse to one grid step, split it in
    two so both v7x TensorCores get work (no-op when rows is too small)."""
    sp = _sublane_pack(dtype)
    if pl.cdiv(rows, tile_r) < 2 and rows >= 2 * sp:
        tile_r = max(sp, _round_up(pl.cdiv(rows, 2), sp))
    return tile_r


# ---------------------------------------------------------------------------
# Pass 1a: spatially tiled row-sum (global average pool, without the divide)
# ---------------------------------------------------------------------------
def _pool_sum_kernel(ctx_ref, acc_ref, *, S, tile_s, acc_w):
    # ctx_ref: (tile_r, tile_s) native dtype.
    # acc_ref: (tile_r, acc_w) f32, VMEM-resident across the reduction axis k.
    k = pl.program_id(1)
    tile = ctx_ref[...].astype(jnp.float32)

    rem = S % tile_s
    if rem != 0:
        # cdiv grid: the last k block reads unspecified data past S -> mask it.
        lane = jax.lax.broadcasted_iota(jnp.int32, tile.shape, 1)
        limit = jnp.where(k == pl.num_programs(1) - 1, rem, tile_s)
        tile = jnp.where(lane < limit, tile, 0.0)

    # Lane-wide partial sum: pure VPU adds of acc_w-wide chunks (no XLU
    # cross-lane reduce, no narrow (tile_r, 1) stores).  tile_s % acc_w == 0.
    part = tile[:, 0:acc_w]
    for j in range(1, tile_s // acc_w):
        part = part + tile[:, j * acc_w:(j + 1) * acc_w]

    @pl.when(k == 0)
    def _():
        acc_ref[...] = part

    @pl.when(k != 0)
    def _():
        acc_ref[...] = acc_ref[...] + part


def _pallas_row_mean(x2d):
    """x2d: (rows, S) -> (rows,) f32 mean over the last axis."""
    rows, S = x2d.shape
    tile_r, tile_s = _pick_tiles(rows, S, x2d.dtype, _POOL_BLOCK_BYTES)
    # rows is the only parallel axis of this pass -> make sure it can shard.
    tile_r = _split_rows_for_megacore(tile_r, rows, x2d.dtype)
    acc_w = 128 if tile_s >= 128 else tile_s

    lane_sums = pl.pallas_call(
        functools.partial(_pool_sum_kernel, S=S, tile_s=tile_s, acc_w=acc_w),
        out_shape=jax.ShapeDtypeStruct((rows, acc_w), jnp.float32),
        grid_spec=pltpu.PrefetchScalarGridSpec(
            num_scalar_prefetch=0,
            grid=(pl.cdiv(rows, tile_r), pl.cdiv(S, tile_s)),
            in_specs=[pl.BlockSpec((tile_r, tile_s), lambda r, k: (r, k))],
            out_specs=pl.BlockSpec((tile_r, acc_w), lambda r, k: (r, 0)),
        ),
        compiler_params=pltpu.CompilerParams(
            dimension_semantics=("parallel", "arbitrary"),
            vmem_limit_bytes=_VMEM_LIMIT),
    )(x2d)
    # Final tiny cross-lane reduction (O(rows*128)) in the wrapper.
    return jnp.sum(lane_sums, axis=-1) / jnp.float32(S)


# ---------------------------------------------------------------------------
# Pass 2: elementwise apply  out = x * (scale + 1)
# ---------------------------------------------------------------------------
def _apply_kernel(scale_ref, x_ref, o_ref):
    # scale_ref: (tile_r, 1), already (sigmoid(..) + 1) cast to x's dtype.
    o_ref[...] = x_ref[...] * scale_ref[...]


def _pallas_apply_scale(x2d, scale_col):
    """x2d: (rows, S); scale_col: (rows, 1) in x2d.dtype -> x * scale (same dtype)."""
    rows, S = x2d.shape
    tile_r, tile_s = _pick_tiles(rows, S, x2d.dtype, _APPLY_BLOCK_BYTES)
    if pl.cdiv(S, tile_s) < 2:
        # Lane axis alone can't feed both v7x TensorCores -> split the row axis.
        tile_r = _split_rows_for_megacore(tile_r, rows, x2d.dtype)

    # cdiv grid: ragged tail blocks read garbage past the array and their OOB
    # writes are discarded -- correct for a pure elementwise op, so no wrapper
    # jnp.pad / output slice (no extra x-sized HBM passes).
    return pl.pallas_call(
        _apply_kernel,
        out_shape=jax.ShapeDtypeStruct((rows, S), x2d.dtype),
        grid_spec=pltpu.PrefetchScalarGridSpec(
            num_scalar_prefetch=0,
            grid=(pl.cdiv(rows, tile_r), pl.cdiv(S, tile_s)),
            in_specs=[
                pl.BlockSpec((tile_r, 1), lambda r, s: (r, 0)),        # tiny scale column
                pl.BlockSpec((tile_r, tile_s), lambda r, s: (r, s)),   # x tile
            ],
            out_specs=pl.BlockSpec((tile_r, tile_s), lambda r, s: (r, s)),
        ),
        compiler_params=pltpu.CompilerParams(
            dimension_semantics=("parallel", "parallel"),
            vmem_limit_bytes=_VMEM_LIMIT),
    )(scale_col, x2d)


# ---------------------------------------------------------------------------
# Full SEFusion forward
# ---------------------------------------------------------------------------
def se_fusion(x, context, w1, b1, w2, b2):
    """x: (N, C_in, D, H, W), context: (N, C_ctx, Dc, Hc, Wc).
    w1: (C_hid, C_ctx), b1: (C_hid,), w2: (C_in, C_hid), b2: (C_in,)."""
    # TODO(synk): the PyTorch `save_attn` / `last_scale` (detach().cpu()) debug
    # hook is a host-side side effect with no Pallas equivalent; omitted.
    N, C_in, D, H, W = x.shape
    _, C_ctx, Dc, Hc, Wc = context.shape
    S = D * H * W
    Sc = Dc * Hc * Wc

    # Pass 1a: AdaptiveAvgPool3d(1) == per-(n, c_ctx) row mean (Pallas, tiled).
    pooled = _pallas_row_mean(context.reshape(N * C_ctx, Sc)).reshape(N, C_ctx)

    # Pass 1b: tiny channel MLP (1x1x1 convs) + sigmoid in f32, plain JAX.
    # Fold the "+1" of `x*scale + x` and the dtype cast here (O(N*C) work).
    w1f, b1f = w1.astype(jnp.float32), b1.astype(jnp.float32)
    w2f, b2f = w2.astype(jnp.float32), b2.astype(jnp.float32)
    h = jnp.maximum(pooled @ w1f.T + b1f, 0.0)                 # (N, C_hid)
    scale = jax.nn.sigmoid(h @ w2f.T + b2f)                    # (N, C_in) f32
    mult = (scale + 1.0).astype(x.dtype).reshape(N * C_in, 1)  # (N*C_in, 1)

    # Pass 2: out = x * (scale + 1), tiled elementwise apply.
    out2d = _pallas_apply_scale(x.reshape(N * C_in, S), mult)
    return out2d.reshape(N, C_in, D, H, W)


# ---------------------------------------------------------------------------
# Pure-JAX reference mirroring the PyTorch forward
# ---------------------------------------------------------------------------
def se_fusion_ref(x, context, w1, b1, w2, b2):
    pooled = jnp.mean(context, axis=(2, 3, 4))                 # (N, C_ctx)
    h = jnp.maximum(pooled @ w1.T + b1, 0.0)                   # (N, C_hid)
    scale = jax.nn.sigmoid(h @ w2.T + b2)                      # (N, C_in)
    scale = scale[:, :, None, None, None]
    return x * scale + x


if __name__ == "__main__":
    key = jax.random.PRNGKey(0)

    # Small shapes consistent with the module.
    N, C_in, C_ctx, reduction = 2, 16, 4, 8
    C_hid = C_in // reduction                                  # 2
    D, H, W = 4, 8, 8

    k_x, k_c, k_w1, k_b1, k_w2, k_b2 = jax.random.split(key, 6)
    x = jax.random.normal(k_x, (N, C_in, D, H, W), dtype=jnp.float32)
    context = jax.random.normal(k_c, (N, C_ctx, D, H, W), dtype=jnp.float32)

    # Deterministic 1x1x1 Conv3d parameters (weights squeezed to 2-D matrices).
    w1 = 0.1 * jax.random.normal(k_w1, (C_hid, C_ctx), dtype=jnp.float32)
    b1 = 0.1 * jax.random.normal(k_b1, (C_hid,), dtype=jnp.float32)
    w2 = 0.1 * jax.random.normal(k_w2, (C_in, C_hid), dtype=jnp.float32)
    b2 = 0.1 * jax.random.normal(k_b2, (C_in,), dtype=jnp.float32)

    out = se_fusion(x, context, w1, b1, w2, b2)
    out = jax.block_until_ready(out)

    ref = se_fusion_ref(x, context, w1, b1, w2, b2)
    assert out.shape == ref.shape
    assert jnp.allclose(out, ref, atol=1e-5, rtol=1e-5), "mismatch vs reference"

    print("KERNEL_OK")
</pallas_src>

<mosaic_0001>
module attributes {stable_mosaic.version = 11 : i64} {
  func.func @_pool_sum_kernel(%arg0: i32, %arg1: i32, %arg2: memref<8x256xf32, #tpu.memory_space<vmem>>, %arg3: memref<8x128xf32, #tpu.memory_space<vmem>>) attributes {dimension_semantics = [#tpu.dimension_semantics<parallel>, #tpu.dimension_semantics<arbitrary>], iteration_bounds = array<i64: 1, 1>, scalar_prefetch = 0 : i64, scratch_operands = 0 : i64, tpu.core_type = #tpu.core_type<tc>, window_params = [{transform_indices = @transform_0, window_bounds = array<i64: 8, 256>}, {transform_indices = @transform_1, window_bounds = array<i64: 8, 128>}]} {
    %c0 = arith.constant 0 : index
    %c0_0 = arith.constant 0 : index
    %0 = vector.load %arg2[%c0, %c0_0] : memref<8x256xf32, #tpu.memory_space<vmem>>, vector<8x256xf32>
    %1 = vector.extract_strided_slice %0 {offsets = [0, 0], sizes = [8, 128], strides = [1, 1]} : vector<8x256xf32> to vector<8x128xf32>
    %2 = vector.extract_strided_slice %0 {offsets = [0, 128], sizes = [8, 128], strides = [1, 1]} : vector<8x256xf32> to vector<8x128xf32>
    %3 = arith.addf %1, %2 : vector<8x128xf32>
    %c0_i32 = arith.constant 0 : i32
    %4 = arith.cmpi eq, %arg1, %c0_i32 : i32
    %5 = arith.extui %4 : i1 to i32
    %c0_i32_1 = arith.constant 0 : i32
    %6 = arith.cmpi ne, %5, %c0_i32_1 : i32
    scf.if %6 {
      %c0_4 = arith.constant 0 : index
      %c0_5 = arith.constant 0 : index
      %10 = vector.load %arg3[%c0_4, %c0_5] : memref<8x128xf32, #tpu.memory_space<vmem>>, vector<8x128xf32>
      tpu.vector_store %arg3[%c0_4, %c0_5], %3 {strides = array<i32>} : memref<8x128xf32, #tpu.memory_space<vmem>>, vector<8x128xf32>,
    } else {
    }
    %c0_i32_2 = arith.constant 0 : i32
    %7 = arith.cmpi ne, %arg1, %c0_i32_2 : i32
    %8 = arith.extui %7 : i1 to i32
    %c0_i32_3 = arith.constant 0 : i32
    %9 = arith.cmpi ne, %8, %c0_i32_3 : i32
    scf.if %9 {
      %c0_4 = arith.constant 0 : index
      %c0_5 = arith.constant 0 : index
      %10 = vector.load %arg3[%c0_4, %c0_5] : memref<8x128xf32, #tpu.memory_space<vmem>>, vector<8x128xf32>
      %11 = arith.addf %10, %3 : vector<8x128xf32>
      %c0_6 = arith.constant 0 : index
      %c0_7 = arith.constant 0 : index
      %12 = vector.load %arg3[%c0_6, %c0_7] : memref<8x128xf32, #tpu.memory_space<vmem>>, vector<8x128xf32>
      tpu.vector_store %arg3[%c0_6, %c0_7], %11 {strides = array<i32>} : memref<8x128xf32, #tpu.memory_space<vmem>>, vector<8x128xf32>,
    } else {
    }
    return
  }
  func.func @transform_0(%arg0: i32, %arg1: i32) -> (i32, i32) {
    %c0_i32 = arith.constant 0 : i32
    return %arg0, %arg1 : i32, i32
  }
  func.func @transform_1(%arg0: i32, %arg1: i32) -> (i32, i32) {
    %c0_i32 = arith.constant 0 : i32
    %c0_i32_0 = arith.constant 0 : i32
    return %arg0, %c0_i32 : i32, i32
  }
}

</mosaic_0001>

<llo_original>
// kernel: tpu_custom_call.1
$region0: #{tpu_custom_call.1}
  #allocation0 [shape = 'u32[]', space=smem, size = 0x4, offset = 0x4, fixed_abs, tag = 'smem constant byte address 0x4 - core index']
  #allocation1 [shape = 'u32[72,128]{1,0:T(1,128)}', space=vmem, size = 0x9000, scoped, tag = 'internal scratch']
  %s0 = inlined_call_operand.hbm [shape: f32[8,256], index: 0, kind: input, shape index: {}]
  %s1 = inlined_call_operand.hbm [shape: f32[8,128], index: 1, kind: output, shape index: {}]
  %s2 = sld [smem:[#allocation0]]
  $region26: #{tpu_custom_call.1} parent=0
    _
  %s4 = ssub.s32 1, %s2
  %s5 = scalar_select 0, %s4, %s2
  $region1: #{tpu_custom_call.1} parent=0
    #allocation2 [shape = 'u8[8192]{0}', space=vmem, size = 0x2000, scoped, tag = 'input window, operand 0, single buffered']
    #allocation3 [shape = 's32[1]{0}', space=sflag, size = 0x4, scoped, tag = 'scoped memory for tpu_custom_call.1']
    #allocation4 [shape = 's32[1]{0}', space=sflag, size = 0x4, scoped, tag = 'scoped memory for tpu_custom_call.1']
    #allocation5 [shape = 'u8[4096]{0}', space=vmem, size = 0x1000, scoped, tag = 'output window, operand 0, single buffered']
    %6 = vsyncpa [#allocation3], 0
    %7 = vsyncpa [#allocation4], 0
    // Predicated region
    $region2: #{tpu_custom_call.1} parent=1 // pred_check
      _
    $region3: #{tpu_custom_call.1} parent=1 // pred_check_branch
      %9 = sbr.rel (0) target = $region5
    $region4: #{tpu_custom_call.1} parent=1 // pred_region
      %11 = vsyncadd [#allocation3], 0
      %s13 = sshll.u32 %s0, 4
      %s14 = int_to_ptr.hbm [resolvable:$true] %s13
      %s15 = sshll.u32 [#allocation2], 4
      %s16 = int_to_ptr.vmem [resolvable:$true] %s15
      %18 = dma.hbm_to_vmem [thread:$0]  %s14, 256, %s16, [#allocation3]
    $region5: #{tpu_custom_call.1} parent=1 // pred_fallthru
      _
    // Predicated region
    $region6: #{tpu_custom_call.1} parent=1 // pred_check
      _
    $region7: #{tpu_custom_call.1} parent=1 // pred_check_branch
      %20 = sbr.rel (0) target = $region9
    $region8: #{tpu_custom_call.1} parent=1 // pred_region
      %22 = dma.done [#allocation3], 256
    $region9: #{tpu_custom_call.1} parent=1 // pred_fallthru
      _
    %v23 = vld [vmem:[#allocation2] sm:$0xff]
    %v24 = vld [vmem:[#allocation2 + $0x8] sm:$0xff]
    %v25 = vadd.f32 %v23, %v24
    %p26 = scmp.eq.s32.totalorder 0, 0
    // Predicated region
    $region10: #{tpu_custom_call.1} parent=1 // pred_check
      %p27 = pneg %p26
    $region11: #{tpu_custom_call.1} parent=1 // pred_check_branch
      %29 = sbr.rel (%p27) target = $region13
    $region12: #{tpu_custom_call.1} parent=1 // pred_region
      %30 = vst [vmem:[#allocation5] sm:$0xff] %v25
    $region13: #{tpu_custom_call.1} parent=1 // pred_fallthru
      _
    %p31 = scmp.ne.s32.totalorder 0, 0
    // Predicated region
    $region14: #{tpu_custom_call.1} parent=1 // pred_check
      %p32 = pneg %p31
    $region15: #{tpu_custom_call.1} parent=1 // pred_check_branch
      %34 = sbr.rel (%p32) target = $region17
    $region16: #{tpu_custom_call.1} parent=1 // pred_region
      %v35 = vld [vmem:[#allocation5] sm:$0xff]
      %v36 = vadd.f32 %v35, %v25
      %37 = vst [vmem:[#allocation5] sm:$0xff] %v36
    $region17: #{tpu_custom_call.1} parent=1 // pred_fallthru
      _
    // Predicated region
    $region18: #{tpu_custom_call.1} parent=1 // pred_check
      _
    $region19: #{tpu_custom_call.1} parent=1 // pred_check_branch
      %39 = sbr.rel (0) target = $region21
    $region20: #{tpu_custom_call.1} parent=1 // pred_region
      %41 = vsyncadd [#allocation4], 0
      %s43 = sshll.u32 [#allocation5], 4
      %s44 = int_to_ptr.vmem [resolvable:$true] %s43
      %s45 = sshll.u32 %s1, 4
      %s46 = int_to_ptr.hbm [resolvable:$true] %s45
      %48 = dma.vmem_to_hbm [thread:$0]  %s44, 128, %s46, [#allocation4]
    $region21: #{tpu_custom_call.1} parent=1 // pred_fallthru
      _
    // Predicated region
    $region22: #{tpu_custom_call.1} parent=1 // pred_check
      _
    $region23: #{tpu_custom_call.1} parent=1 // pred_check_branch
      %50 = sbr.rel (0) target = $region25
    $region24: #{tpu_custom_call.1} parent=1 // pred_region
      %52 = dma.done [#allocation4], 128
    $region25: #{tpu_custom_call.1} parent=1 // pred_fallthru
      _
    %53 = vsyncpa [#allocation3], 1
    %54 = vsyncpa [#allocation4], 1

</llo_original>
